<compile_context>
chip_gen: v5e
topology: v5e:2x2
jax: 0.10.0
libtpu: 0.0.40
codegen_flags: <defaults>
</compile_context>

<pallas_src>
import jax
import jax.numpy as jnp
from jax.experimental import pallas as pl
from jax.experimental.pallas import tpu as pltpu


def se_kernel(x_se_ref, w1t_ref, b1_ref, w2_ref, b2_ref, x_hbm_ref,
              out_ref, x_vmem, dma_sem):
    # Kick off the big x copy first; it overlaps the squeeze-path compute below.
    x_copy = pltpu.make_async_copy(x_hbm_ref, x_vmem, dma_sem)
    x_copy.start()

    # Squeeze path on VPU/XLU (no MXU, no in-kernel relayouts).
    # h[1, Cmid] = relu( sum over C (sublanes) of W1^T[C, Cmid] * x_se[C, 1] + b1 )
    h = jnp.sum(w1t_ref[...] * x_se_ref[...], axis=0, keepdims=True) + b1_ref[...]
    h = jnp.maximum(h, 0.0)
    # s[C, 1] = sigmoid( sum over Cmid (lanes) of W2[C, Cmid] * h[1, Cmid] + b2 )
    s = jnp.sum(w2_ref[...] * h, axis=1, keepdims=True) + b2_ref[...]
    s = jax.nn.sigmoid(s)

    # Gate multiply: [C, HW] * [C, 1] broadcast along the lane (HW) axis.
    x_copy.wait()
    out_ref[...] = x_vmem[...] * s


def se_block(x127, x128, w1, b1, w2, b2):
    """x127: [N, C, H, W], x128: [N, C, 1, 1] (N == 1). Returns [N, C, H, W]."""
    n, c, h, w = x127.shape
    assert n == 1  # TODO(synk): add a "parallel" batch grid axis if N > 1 ever shows up
    cmid = w1.shape[0]
    hw = h * w

    # Free (contiguous) reshapes — no NCHW<->NHWC transposes, no extra HBM pass.
    x_flat = x127.reshape(c, hw)            # [C, HW]
    x_se = x128.reshape(c, 1)               # [C, 1]
    w1t = w1.reshape(cmid, c).T             # [C, Cmid] — tiny one-time transpose outside the kernel
    b1m = b1.reshape(1, cmid)               # [1, Cmid]
    w2m = w2.reshape(c, cmid)               # [C, Cmid]
    b2m = b2.reshape(c, 1)                  # [C, 1]

    vmem = pl.BlockSpec(memory_space=pltpu.MemorySpace.VMEM)
    cost = pl.CostEstimate(
        flops=4 * c * cmid + 2 * (c + cmid) + cmid + c * hw,   # 2 matvecs + biases/relu + gate mul
        transcendentals=2 * c,                                 # sigmoid ~ exp + recip per channel
        bytes_accessed=4 * (2 * c * hw + 2 * c * cmid + 2 * c + cmid),
    )

    out_flat = pl.pallas_call(
        se_kernel,
        out_shape=jax.ShapeDtypeStruct((c, hw), jnp.float32),
        in_specs=[vmem, vmem, vmem, vmem, vmem,
                  pl.BlockSpec(memory_space=pl.ANY)],          # x stays in HBM; copied manually
        out_specs=vmem,
        scratch_shapes=[pltpu.VMEM((c, hw), jnp.float32),      # landing buffer for x
                        pltpu.SemaphoreType.DMA],
        input_output_aliases={5: 0},                           # write the gate result over x
        cost_estimate=cost,
    )(x_se, w1t, b1m, w2m, b2m, x_flat)

    # Free reshape back to NCHW.
    return out_flat.reshape(1, c, h, w)


# x127 (arg 0) is donated so input_output_aliases gives a true in-place update.
se_block_jit = jax.jit(se_block, donate_argnums=(0,))


def reference(x127, x128, w1, b1, w2, b2):
    n, c, h, w = x127.shape
    cmid = w1.shape[0]
    x_se = x128.reshape(1, c)
    hmid = jnp.maximum(x_se @ w1.reshape(cmid, c).T + b1.reshape(1, cmid), 0.0)
    s = jax.nn.sigmoid(hmid @ w2.reshape(c, cmid).T + b2.reshape(1, c))
    return x127 * s.reshape(1, c, 1, 1)


if __name__ == "__main__":
    C, Cmid, H, W = 208, 52, 14, 14
    key = jax.random.PRNGKey(0)
    k1, k2, k3, k4, k5, k6 = jax.random.split(key, 6)

    # Inputs (shapes from the PyTorch module).
    x127 = jax.random.normal(k1, (1, C, H, W), jnp.float32)
    x128 = jax.random.normal(k2, (1, C, 1, 1), jnp.float32)

    # Deterministic parameter init (Conv2d 1x1 weights/biases).
    w1 = jax.random.normal(k3, (Cmid, C, 1, 1), jnp.float32) * 0.05
    b1 = jax.random.normal(k4, (Cmid,), jnp.float32) * 0.05
    w2 = jax.random.normal(k5, (C, Cmid, 1, 1), jnp.float32) * 0.05
    b2 = jax.random.normal(k6, (C,), jnp.float32) * 0.05

    # Compute the reference first: x127 is donated to the jitted kernel call.
    ref = jax.block_until_ready(reference(x127, x128, w1, b1, w2, b2))

    out = jax.block_until_ready(se_block_jit(x127, x128, w1, b1, w2, b2))
    assert out.shape == (1, C, H, W)
    assert jnp.allclose(out, ref, atol=1e-5, rtol=1e-5)
    print("KERNEL_OK")
</pallas_src>

<mosaic_0001>
module attributes {stable_mosaic.version = 11 : i64} {
  func.func @se_kernel(%arg0: memref<208x1xf32, #tpu.memory_space<vmem>>, %arg1: memref<208x52xf32, #tpu.memory_space<vmem>>, %arg2: memref<1x52xf32, #tpu.memory_space<vmem>>, %arg3: memref<208x52xf32, #tpu.memory_space<vmem>>, %arg4: memref<208x1xf32, #tpu.memory_space<vmem>>, %arg5: memref<208x196xf32, #tpu.memory_space<any>>, %arg6: memref<208x196xf32, #tpu.memory_space<vmem>>, %arg7: memref<208x196xf32, #tpu.memory_space<vmem>>, %arg8: memref<!tpu.dma_semaphore, #tpu.memory_space<semaphore_mem>>) attributes {dimension_semantics = [], scalar_prefetch = 0 : i64, scratch_operands = 2 : i64, tpu.core_type = #tpu.core_type<tc>} {
    tpu.enqueue_dma source(%arg5 : memref<208x196xf32, #tpu.memory_space<any>>) target(%arg7 : memref<208x196xf32, #tpu.memory_space<vmem>>) target_semaphore(%arg8 : memref<!tpu.dma_semaphore, #tpu.memory_space<semaphore_mem>>)
    %c0 = arith.constant 0 : index
    %c0_0 = arith.constant 0 : index
    %0 = vector.load %arg1[%c0, %c0_0] : memref<208x52xf32, #tpu.memory_space<vmem>>, vector<208x52xf32>
    %c0_1 = arith.constant 0 : index
    %c0_2 = arith.constant 0 : index
    %1 = vector.load %arg0[%c0_1, %c0_2] : memref<208x1xf32, #tpu.memory_space<vmem>>, vector<208x1xf32>
    %2 = vector.broadcast %1 : vector<208x1xf32> to vector<208x52xf32>
    %3 = arith.mulf %0, %2 : vector<208x52xf32>
    %cst = arith.constant dense<0.000000e+00> : vector<52xf32>
    %4 = vector.multi_reduction <add>, %3, %cst [0] : vector<208x52xf32> to vector<52xf32>
    %5 = vector.shape_cast %4 : vector<52xf32> to vector<1x52xf32>
    %c0_3 = arith.constant 0 : index
    %c0_4 = arith.constant 0 : index
    %6 = vector.load %arg2[%c0_3, %c0_4] : memref<1x52xf32, #tpu.memory_space<vmem>>, vector<1x52xf32>
    %7 = arith.addf %5, %6 : vector<1x52xf32>
    %cst_5 = arith.constant 0.000000e+00 : f32
    %8 = vector.broadcast %cst_5 : f32 to vector<1x52xf32>
    %9 = arith.maximumf %7, %8 : vector<1x52xf32>
    %c0_6 = arith.constant 0 : index
    %c0_7 = arith.constant 0 : index
    %10 = vector.load %arg3[%c0_6, %c0_7] : memref<208x52xf32, #tpu.memory_space<vmem>>, vector<208x52xf32>
    %11 = vector.broadcast %9 : vector<1x52xf32> to vector<208x52xf32>
    %12 = arith.mulf %10, %11 : vector<208x52xf32>
    %cst_8 = arith.constant dense<0.000000e+00> : vector<208xf32>
    %13 = vector.multi_reduction <add>, %12, %cst_8 [1] : vector<208x52xf32> to vector<208xf32>
    %14 = vector.shape_cast %13 : vector<208xf32> to vector<208x1xf32>
    %c0_9 = arith.constant 0 : index
    %c0_10 = arith.constant 0 : index
    %15 = vector.load %arg4[%c0_9, %c0_10] : memref<208x1xf32, #tpu.memory_space<vmem>>, vector<208x1xf32>
    %16 = arith.addf %14, %15 : vector<208x1xf32>
    %17 = arith.negf %16 : vector<208x1xf32>
    %18 = math.exp %17 : vector<208x1xf32>
    %cst_11 = arith.constant 1.000000e+00 : f32
    %19 = vector.broadcast %cst_11 : f32 to vector<208x1xf32>
    %20 = arith.addf %19, %18 : vector<208x1xf32>
    %21 = arith.divf %19, %20 : vector<208x1xf32>
    tpu.wait_dma2 semaphore(%arg8 : memref<!tpu.dma_semaphore, #tpu.memory_space<semaphore_mem>>) src(%arg5 : memref<208x196xf32, #tpu.memory_space<any>>) dst(%arg7 : memref<208x196xf32, #tpu.memory_space<vmem>>)
    %c0_12 = arith.constant 0 : index
    %c0_13 = arith.constant 0 : index
    %22 = vector.load %arg7[%c0_12, %c0_13] : memref<208x196xf32, #tpu.memory_space<vmem>>, vector<208x196xf32>
    %23 = vector.broadcast %21 : vector<208x1xf32> to vector<208x196xf32>
    %24 = arith.mulf %22, %23 : vector<208x196xf32>
    %c0_14 = arith.constant 0 : index
    %c0_15 = arith.constant 0 : index
    %25 = vector.load %arg6[%c0_14, %c0_15] : memref<208x196xf32, #tpu.memory_space<vmem>>, vector<208x196xf32>
    tpu.vector_store %arg6[%c0_14, %c0_15], %24 {strides = array<i32>} : memref<208x196xf32, #tpu.memory_space<vmem>>, vector<208x196xf32>,
    return
  }
}

</mosaic_0001>

<llo_original>
// kernel: se_block.1
$region0: #{se_block.1}
  #allocation0 [shape = 'u32[]', space=smem, size = 0x4, offset = 0x4, fixed_abs, tag = 'smem constant byte address 0x4 - core index']
  #allocation1 [shape = 'u32[72,128]{1,0:T(1,128)}', space=vmem, size = 0x9000, scoped, tag = 'internal scratch']
  #allocation2 [shape = 'f32[208,196]{1,0:T(8,128)}', space=vmem, size = 0x34000, scoped, tag = 'scratch operand']
  #allocation3 [shape = 's32[1]{0}', space=sflag, size = 0x4, scoped, tag = 'scratch operand']
  #allocation4 [shape = 's32[]', space=sflag, size = 0x4, offset = 0, fixed_abs, tag = 'sflag constant byte address 0x0 - dummy sync flag']
  %s0 = inlined_call_operand.vmem [shape: f32[208,1], index: 0, kind: input, shape index: {}]
  %s1 = inlined_call_operand.vmem [shape: f32[208,52], index: 1, kind: input, shape index: {}]
  %s2 = inlined_call_operand.vmem [shape: f32[1,52], index: 2, kind: input, shape index: {}]
  %s3 = inlined_call_operand.vmem [shape: f32[208,52], index: 3, kind: input, shape index: {}]
  %s4 = inlined_call_operand.vmem [shape: f32[208,1], index: 4, kind: input, shape index: {}]
  %s5 = inlined_call_operand.vmem [shape: f32[208,196], index: 5, kind: input, shape index: {}, may-alias: {5,6}]
  %s6 = inlined_call_operand.vmem [shape: f32[208,196], index: 6, kind: output, shape index: {}, may-alias: {5,6}]
  %s7 = sld [smem:[#allocation0]]
  $region49: #{se_block.1} parent=0
    _
  %s9 = ssub.s32 1, %s7
  %s10 = scalar_select 0, %s9, %s7
  // Predicated region
  $region2: #{se_block.1} parent=0 // pred_check
    _
  $region3: #{se_block.1} parent=0 // pred_check_branch
    %12 = sbr.rel (0) target = $region5
  $region4: #{se_block.1} parent=0 // pred_region
    _
  $region5: #{se_block.1} parent=0 // pred_fallthru
    _
  // Predicated region
  $region6: #{se_block.1} parent=0 // pred_check
    _
  $region7: #{se_block.1} parent=0 // pred_check_branch
    %14 = sbr.rel (0) target = $region9
  $region8: #{se_block.1} parent=0 // pred_region
    _
  $region9: #{se_block.1} parent=0 // pred_fallthru
    _
  // Predicated region
  $region10: #{se_block.1} parent=0 // pred_check
    _
  $region11: #{se_block.1} parent=0 // pred_check_branch
    %16 = sbr.rel (0) target = $region13
  $region12: #{se_block.1} parent=0 // pred_region
    _
  $region13: #{se_block.1} parent=0 // pred_fallthru
    _
  // Predicated region
  $region14: #{se_block.1} parent=0 // pred_check
    _
  $region15: #{se_block.1} parent=0 // pred_check_branch
    %18 = sbr.rel (0) target = $region17
  $region16: #{se_block.1} parent=0 // pred_region
    _
  $region17: #{se_block.1} parent=0 // pred_fallthru
    _
  // Predicated region
  $region18: #{se_block.1} parent=0 // pred_check
    _
  $region19: #{se_block.1} parent=0 // pred_check_branch
    %20 = sbr.rel (0) target = $region21
  $region20: #{se_block.1} parent=0 // pred_region
    _
  $region21: #{se_block.1} parent=0 // pred_fallthru
    _
  // Predicated region
  $region22: #{se_block.1} parent=0 // pred_check
    _
  $region23: #{se_block.1} parent=0 // pred_check_branch
    %22 = sbr.rel (0) target = $region25
  $region24: #{se_block.1} parent=0 // pred_region
    loop: start=0, step=1, limit=1
    $region26: #{se_block.1} parent=24 // loop_pre_header
      _
    $region27: #{se_block.1} parent=24 // loop_header
      %s24 = sphi 0, %s28
      %p25 = scmp.ge.s32.totalorder %s24, 1
      %s29 = sphi %s5, %s5
      %s30 = sphi [#allocation2], [#allocation2]
    $region28: #{se_block.1} parent=24 // loop_header_branch
      %27 = sbr.rel (%p25) target = $region32
    $region29: #{se_block.1} parent=24 // loop_body
      %v31 = vld [vmem:[%s29] sm:$0xff]
      %32 = vst [vmem:[%s30] sm:$0xff] %v31
      %v33 = vld [vmem:[%s29 + $0x8] sm:$0xff]
      %34 = vst [vmem:[%s30 + $0x8] sm:$0xff] %v33
      %v35 = vld [vmem:[%s29 + $0x10] sm:$0xff]
      %36 = vst [vmem:[%s30 + $0x10] sm:$0xff] %v35
      %v37 = vld [vmem:[%s29 + $0x18] sm:$0xff]
      %38 = vst [vmem:[%s30 + $0x18] sm:$0xff] %v37
      %v39 = vld [vmem:[%s29 + $0x20] sm:$0xff]
      %40 = vst [vmem:[%s30 + $0x20] sm:$0xff] %v39
      %v41 = vld [vmem:[%s29 + $0x28] sm:$0xff]
      %42 = vst [vmem:[%s30 + $0x28] sm:$0xff] %v41
      %v43 = vld [vmem:[%s29 + $0x30] sm:$0xff]
      %44 = vst [vmem:[%s30 + $0x30] sm:$0xff] %v43
      %v45 = vld [vmem:[%s29 + $0x38] sm:$0xff]
      %46 = vst [vmem:[%s30 + $0x38] sm:$0xff] %v45
      %v47 = vld [vmem:[%s29 + $0x40] sm:$0xff]
      %48 = vst [vmem:[%s30 + $0x40] sm:$0xff] %v47
      %v49 = vld [vmem:[%s29 + $0x48] sm:$0xff]
      %50 = vst [vmem:[%s30 + $0x48] sm:$0xff] %v49
      %v51 = vld [vmem:[%s29 + $0x50] sm:$0xff]
      %52 = vst [vmem:[%s30 + $0x50] sm:$0xff] %v51
      %v53 = vld [vmem:[%s29 + $0x58] sm:$0xff]
      %54 = vst [vmem:[%s30 + $0x58] sm:$0xff] %v53
      %v55 = vld [vmem:[%s29 + $0x60] sm:$0xff]
      %56 = vst [vmem:[%s30 + $0x60] sm:$0xff] %v55
      %v57 = vld [vmem:[%s29 + $0x68] sm:$0xff]
      %58 = vst [vmem:[%s30 + $0x68] sm:$0xff] %v57
      %v59 = vld [vmem:[%s29 + $0x70] sm:$0xff]
      %60 = vst [vmem:[%s30 + $0x70] sm:$0xff] %v59
      %v61 = vld [vmem:[%s29 + $0x78] sm:$0xff]
      %62 = vst [vmem:[%s30 + $0x78] sm:$0xff] %v61
      %v63 = vld [vmem:[%s29 + $0x80] sm:$0xff]
      %64 = vst [vmem:[%s30 + $0x80] sm:$0xff] %v63
      %v65 = vld [vmem:[%s29 + $0x88] sm:$0xff]
      %66 = vst [vmem:[%s30 + $0x88] sm:$0xff] %v65
      %v67 = vld [vmem:[%s29 + $0x90] sm:$0xff]
      %68 = vst [vmem:[%s30 + $0x90] sm:$0xff] %v67
      %v69 = vld [vmem:[%s29 + $0x98] sm:$0xff]
      %70 = vst [vmem:[%s30 + $0x98] sm:$0xff] %v69
      %v71 = vld [vmem:[%s29 + $0xa0] sm:$0xff]
      %72 = vst [vmem:[%s30 + $0xa0] sm:$0xff] %v71
      %v73 = vld [vmem:[%s29 + $0xa8] sm:$0xff]
      %74 = vst [vmem:[%s30 + $0xa8] sm:$0xff] %v73
      %v75 = vld [vmem:[%s29 + $0xb0] sm:$0xff]
      %76 = vst [vmem:[%s30 + $0xb0] sm:$0xff] %v75
      %v77 = vld [vmem:[%s29 + $0xb8] sm:$0xff]
      %78 = vst [vmem:[%s30 + $0xb8] sm:$0xff] %v77
      %v79 = vld [vmem:[%s29 + $0xc0] sm:$0xff]
      %80 = vst [vmem:[%s30 + $0xc0] sm:$0xff] %v79
      %v81 = vld [vmem:[%s29 + $0xc8] sm:$0xff]
      %82 = vst [vmem:[%s30 + $0xc8] sm:$0xff] %v81
      %v83 = vld [vmem:[%s29 + $0xd0] sm:$0xff]
      %84 = vst [vmem:[%s30 + $0xd0] sm:$0xff] %v83
      %v85 = vld [vmem:[%s29 + $0xd8] sm:$0xff]
      %86 = vst [vmem:[%s30 + $0xd8] sm:$0xff] %v85
      %v87 = vld [vmem:[%s29 + $0xe0] sm:$0xff]
      %88 = vst [vmem:[%s30 + $0xe0] sm:$0xff] %v87
      %v89 = vld [vmem:[%s29 + $0xe8] sm:$0xff]
      %90 = vst [vmem:[%s30 + $0xe8] sm:$0xff] %v89
      %v91 = vld [vmem:[%s29 + $0xf0] sm:$0xff]
      %92 = vst [vmem:[%s30 + $0xf0] sm:$0xff] %v91
      %v93 = vld [vmem:[%s29 + $0xf8] sm:$0xff]
      %94 = vst [vmem:[%s30 + $0xf8] sm:$0xff] %v93
      %v95 = vld [vmem:[%s29 + $0x100] sm:$0xff]
      %96 = vst [vmem:[%s30 + $0x100] sm:$0xff] %v95
      %v97 = vld [vmem:[%s29 + $0x108] sm:$0xff]
      %98 = vst [vmem:[%s30 + $0x108] sm:$0xff] %v97
      %v99 = vld [vmem:[%s29 + $0x110] sm:$0xff]
      %100 = vst [vmem:[%s30 + $0x110] sm:$0xff] %v99
      %v101 = vld [vmem:[%s29 + $0x118] sm:$0xff]
      %102 = vst [vmem:[%s30 + $0x118] sm:$0xff] %v101
      %v103 = vld [vmem:[%s29 + $0x120] sm:$0xff]
      %104 = vst [vmem:[%s30 + $0x120] sm:$0xff] %v103
      %v105 = vld [vmem:[%s29 + $0x128] sm:$0xff]
      %106 = vst [vmem:[%s30 + $0x128] sm:$0xff] %v105
      %v107 = vld [vmem:[%s29 + $0x130] sm:$0xff]
      %108 = vst [vmem:[%s30 + $0x130] sm:$0xff] %v107
      %v109 = vld [vmem:[%s29 + $0x138] sm:$0xff]
      %110 = vst [vmem:[%s30 + $0x138] sm:$0xff] %v109
      %v111 = vld [vmem:[%s29 + $0x140] sm:$0xff]
      %112 = vst [vmem:[%s30 + $0x140] sm:$0xff] %v111
      %v113 = vld [vmem:[%s29 + $0x148] sm:$0xff]
      %114 = vst [vmem:[%s30 + $0x148] sm:$0xff] %v113
      %v115 = vld [vmem:[%s29 + $0x150] sm:$0xff]
      %116 = vst [vmem:[%s30 + $0x150] sm:$0xff] %v115
      %v117 = vld [vmem:[%s29 + $0x158] sm:$0xff]
      %118 = vst [vmem:[%s30 + $0x158] sm:$0xff] %v117
      %v119 = vld [vmem:[%s29 + $0x160] sm:$0xff]
      %120 = vst [vmem:[%s30 + $0x160] sm:$0xff] %v119
      %v121 = vld [vmem:[%s29 + $0x168] sm:$0xff]
      %122 = vst [vmem:[%s30 + $0x168] sm:$0xff] %v121
      %v123 = vld [vmem:[%s29 + $0x170] sm:$0xff]
      %124 = vst [vmem:[%s30 + $0x170] sm:$0xff] %v123
      %v125 = vld [vmem:[%s29 + $0x178] sm:$0xff]
      %126 = vst [vmem:[%s30 + $0x178] sm:$0xff] %v125
      %v127 = vld [vmem:[%s29 + $0x180] sm:$0xff]
      %128 = vst [vmem:[%s30 + $0x180] sm:$0xff] %v127
      %v129 = vld [vmem:[%s29 + $0x188] sm:$0xff]
      %130 = vst [vmem:[%s30 + $0x188] sm:$0xff] %v129
      %v131 = vld [vmem:[%s29 + $0x190] sm:$0xff]
      %132 = vst [vmem:[%s30 + $0x190] sm:$0xff] %v131
      %v133 = vld [vmem:[%s29 + $0x198] sm:$0xff]
      %134 = vst [vmem:[%s30 + $0x198] sm:$0xff] %v133
    $region30: #{se_block.1} parent=24 // loop_footer
      %s28 = sadd.s32 1, %s24
    $region31: #{se_block.1} parent=24 // loop_footer_branch
      %23 = sbr.rel target = $region27
    $region32: #{se_block.1} parent=24 // loop_exit
      _
  $region25: #{se_block.1} parent=0 // pred_fallthru
    _
  // Predicated region
  $region33: #{se_block.1} parent=0 // pred_check
    _
  $region34: #{se_block.1} parent=0 // pred_check_branch
    %136 = sbr.rel target = $region36
  $region35: #{se_block.1} parent=0 // pred_region
    _
  $region36: #{se_block.1} parent=0 // pred_fallthru
    _
  // Predicated region
  $region37: #{se_block.1} parent=0 // pred_check
    _
  $region38: #{se_block.1} parent=0 // pred_check_branch
    %139 = sbr.rel (0) target = $region40
  $region39: #{se_block.1} parent=0 // pred_region
    %140 = vsyncadd [#allocation3], 6656
  $region40: #{se_block.1} parent=0 // pred_fallthru
    _
  %v141 = vld [vmem:[%s1] sm:$0xff]
  %v142 = vld [vmem:[%s1 + $0x8] sm:$0xff]
  %v143 = vld [vmem:[%s1 + $0x10] sm:$0xff]
  %v144 = vld [vmem:[%s1 + $0x18] sm:$0xff]
  %v145 = vld [vmem:[%s1 + $0x20] sm:$0xff]
  %v146 = vld [vmem:[%s1 + $0x28] sm:$0xff]
  %v147 = vld [vmem:[%s1 + $0x30] sm:$0xff]
  %v148 = vld [vmem:[%s1 + $0x38] sm:$0xff]
  %v149 = vld [vmem:[%s1 + $0x40] sm:$0xff]
  %v150 = vld [vmem:[%s1 + $0x48] sm:$0xff]
  %v151 = vld [vmem:[%s1 + $0x50] sm:$0xff]
  %v152 = vld [vmem:[%s1 + $0x58] sm:$0xff]
  %v153 = vld [vmem:[%s1 + $0x60] sm:$0xff]
  %v154 = vld [vmem:[%s1 + $0x68] sm:$0xff]
  %v155 = vld [vmem:[%s1 + $0x70] sm:$0xff]
  %v156 = vld [vmem:[%s1 + $0x78] sm:$0xff]
  %v157 = vld [vmem:[%s1 + $0x80] sm:$0xff]
  %v158 = vld [vmem:[%s1 + $0x88] sm:$0xff]
  %v159 = vld [vmem:[%s1 + $0x90] sm:$0xff]
  %v160 = vld [vmem:[%s1 + $0x98] sm:$0xff]
  %v161 = vld [vmem:[%s1 + $0xa0] sm:$0xff]
  %v162 = vld [vmem:[%s1 + $0xa8] sm:$0xff]
  %v163 = vld [vmem:[%s1 + $0xb0] sm:$0xff]
  %v164 = vld [vmem:[%s1 + $0xb8] sm:$0xff]
  %v165 = vld [vmem:[%s1 + $0xc0] sm:$0xff]
  %v166 = vld [vmem:[%s1 + $0xc8] sm:$0xff]
  %v167 = vld [vmem:[%s0] sm:$0xff]
  %v168 = vld [vmem:[%s0 + $0x8] sm:$0xff]
  %v169 = vld [vmem:[%s0 + $0x10] sm:$0xff]
  %v170 = vld [vmem:[%s0 + $0x18] sm:$0xff]
  %v171 = vld [vmem:[%s0 + $0x20] sm:$0xff]
  %v172 = vld [vmem:[%s0 + $0x28] sm:$0xff]
  %v173 = vld [vmem:[%s0 + $0x30] sm:$0xff]
  %v174 = vld [vmem:[%s0 + $0x38] sm:$0xff]
  %v175 = vld [vmem:[%s0 + $0x40] sm:$0xff]
  %v176 = vld [vmem:[%s0 + $0x48] sm:$0xff]
  %v177 = vld [vmem:[%s0 + $0x50] sm:$0xff]
  %v178 = vld [vmem:[%s0 + $0x58] sm:$0xff]
  %v179 = vld [vmem:[%s0 + $0x60] sm:$0xff]
  %v180 = vld [vmem:[%s0 + $0x68] sm:$0xff]
  %v181 = vld [vmem:[%s0 + $0x70] sm:$0xff]
  %v182 = vld [vmem:[%s0 + $0x78] sm:$0xff]
  %v183 = vld [vmem:[%s0 + $0x80] sm:$0xff]
  %v184 = vld [vmem:[%s0 + $0x88] sm:$0xff]
  %v185 = vld [vmem:[%s0 + $0x90] sm:$0xff]
  %v186 = vld [vmem:[%s0 + $0x98] sm:$0xff]
  %v187 = vld [vmem:[%s0 + $0xa0] sm:$0xff]
  %v188 = vld [vmem:[%s0 + $0xa8] sm:$0xff]
  %v189 = vld [vmem:[%s0 + $0xb0] sm:$0xff]
  %v190 = vld [vmem:[%s0 + $0xb8] sm:$0xff]
  %v191 = vld [vmem:[%s0 + $0xc0] sm:$0xff]
  %v192 = vld [vmem:[%s0 + $0xc8] sm:$0xff]
  %194 = vset.pattern.permute.xlu0 0
  %195 = vperm.xlu0 %194, %v167
  %v196 = vpop.permute.xlu0 %195
  %199 = vset.pattern.permute.xlu0 0
  %200 = vperm.xlu0 %199, %v168
  %v201 = vpop.permute.xlu0 %200
  %204 = vset.pattern.permute.xlu0 0
  %205 = vperm.xlu0 %204, %v169
  %v206 = vpop.permute.xlu0 %205
  %209 = vset.pattern.permute.xlu0 0
  %210 = vperm.xlu0 %209, %v170
  %v211 = vpop.permute.xlu0 %210
  %214 = vset.pattern.permute.xlu0 0
  %215 = vperm.xlu0 %214, %v171
  %v216 = vpop.permute.xlu0 %215
  %219 = vset.pattern.permute.xlu0 0
  %220 = vperm.xlu0 %219, %v172
  %v221 = vpop.permute.xlu0 %220
  %224 = vset.pattern.permute.xlu0 0
  %225 = vperm.xlu0 %224, %v173
  %v226 = vpop.permute.xlu0 %225
  %229 = vset.pattern.permute.xlu0 0
  %230 = vperm.xlu0 %229, %v174
  %v231 = vpop.permute.xlu0 %230
  %234 = vset.pattern.permute.xlu0 0
  %235 = vperm.xlu0 %234, %v175
  %v236 = vpop.permute.xlu0 %235
  %239 = vset.pattern.permute.xlu0 0
  %240 = vperm.xlu0 %239, %v176
  %v241 = vpop.permute.xlu0 %240
  %244 = vset.pattern.permute.xlu0 0
  %245 = vperm.xlu0 %244, %v177
  %v246 = vpop.permute.xlu0 %245
  %249 = vset.pattern.permute.xlu0 0
  %250 = vperm.xlu0 %249, %v178
  %v251 = vpop.permute.xlu0 %250
  %254 = vset.pattern.permute.xlu0 0
  %255 = vperm.xlu0 %254, %v179
  %v256 = vpop.permute.xlu0 %255
  %259 = vset.pattern.permute.xlu0 0
  %260 = vperm.xlu0 %259, %v180
  %v261 = vpop.permute.xlu0 %260
  %264 = vset.pattern.permute.xlu0 0
  %265 = vperm.xlu0 %264, %v181
  %v266 = vpop.permute.xlu0 %265
  %269 = vset.pattern.permute.xlu0 0
  %270 = vperm.xlu0 %269, %v182
  %v271 = vpop.permute.xlu0 %270
  %274 = vset.pattern.permute.xlu0 0
  %275 = vperm.xlu0 %274, %v183
  %v276 = vpop.permute.xlu0 %275
  %279 = vset.pattern.permute.xlu0 0
  %280 = vperm.xlu0 %279, %v184
  %v281 = vpop.permute.xlu0 %280
  %284 = vset.pattern.permute.xlu0 0
  %285 = vperm.xlu0 %284, %v185
  %v286 = vpop.permute.xlu0 %285
  %289 = vset.pattern.permute.xlu0 0
  %290 = vperm.xlu0 %289, %v186
  %v291 = vpop.permute.xlu0 %290
  %294 = vset.pattern.permute.xlu0 0
  %295 = vperm.xlu0 %294, %v187
  %v296 = vpop.permute.xlu0 %295
  %299 = vset.pattern.permute.xlu0 0
  %300 = vperm.xlu0 %299, %v188
  %v301 = vpop.permute.xlu0 %300
  %304 = vset.pattern.permute.xlu0 0
  %305 = vperm.xlu0 %304, %v189
  %v306 = vpop.permute.xlu0 %305
  %309 = vset.pattern.permute.xlu0 0
  %310 = vperm.xlu0 %309, %v190
  %v311 = vpop.permute.xlu0 %310
  %314 = vset.pattern.permute.xlu0 0
  %315 = vperm.xlu0 %314, %v191
  %v316 = vpop.permute.xlu0 %315
  %319 = vset.pattern.permute.xlu0 0
  %320 = vperm.xlu0 %319, %v192
  %v321 = vpop.permute.xlu0 %320
  %v323 = vmul.f32 %v141, %v196
  %v324 = vmul.f32 %v142, %v201
  %v325 = vmul.f32 %v143, %v206
  %v326 = vmul.f32 %v144, %v211
  %v327 = vmul.f32 %v145, %v216
  %v328 = vmul.f32 %v146, %v221
  %v329 = vmul.f32 %v147, %v226
  %v330 = vmul.f32 %v148, %v231
  %v331 = vmul.f32 %v149, %v236
  %v332 = vmul.f32 %v150, %v241
  %v333 = vmul.f32 %v151, %v246
  %v334 = vmul.f32 %v152, %v251
  %v335 = vmul.f32 %v153, %v256
  %v336 = vmul.f32 %v154, %v261
  %v337 = vmul.f32 %v155, %v266
  %v338 = vmul.f32 %v156, %v271
  %v339 = vmul.f32 %v157, %v276
  %v340 = vmul.f32 %v158, %v281
  %v341 = vmul.f32 %v159, %v286
  %v342 = vmul.f32 %v160, %v291
  %v343 = vmul.f32 %v161, %v296
  %v344 = vmul.f32 %v162, %v301
  %v345 = vmul.f32 %v163, %v306
  %v346 = vmul.f32 %v164, %v311
  %v347 = vmul.f32 %v165, %v316
  %v348 = vmul.f32 %v166, %v321
  %vm349 = vcmask 424960
  %v350 = vsel %vm349, %v323, 0.0
  %v351 = vsel %vm349, %v324, 0.0
  %v352 = vadd.f32 %v350, %v351
  %v353 = vsel %vm349, %v325, 0.0
  %v354 = vadd.f32 %v352, %v353
  %v355 = vsel %vm349, %v326, 0.0
  %v356 = vadd.f32 %v354, %v355
  %v357 = vsel %vm349, %v327, 0.0
  %v358 = vadd.f32 %v356, %v357
  %v359 = vsel %vm349, %v328, 0.0
  %v360 = vadd.f32 %v358, %v359
  %v361 = vsel %vm349, %v329, 0.0
  %v362 = vadd.f32 %v360, %v361
  %v363 = vsel %vm349, %v330, 0.0
  %v364 = vadd.f32 %v362, %v363
  %v365 = vsel %vm349, %v331, 0.0
  %v366 = vadd.f32 %v364, %v365
  %v367 = vsel %vm349, %v332, 0.0
  %v368 = vadd.f32 %v366, %v367
  %v369 = vsel %vm349, %v333, 0.0
  %v370 = vadd.f32 %v368, %v369
  %v371 = vsel %vm349, %v334, 0.0
  %v372 = vadd.f32 %v370, %v371
  %v373 = vsel %vm349, %v335, 0.0
  %v374 = vadd.f32 %v372, %v373
  %v375 = vsel %vm349, %v336, 0.0
  %v376 = vadd.f32 %v374, %v375
  %v377 = vsel %vm349, %v337, 0.0
  %v378 = vadd.f32 %v376, %v377
  %v379 = vsel %vm349, %v338, 0.0
  %v380 = vadd.f32 %v378, %v379
  %v381 = vsel %vm349, %v339, 0.0
  %v382 = vadd.f32 %v380, %v381
  %v383 = vsel %vm349, %v340, 0.0
  %v384 = vadd.f32 %v382, %v383
  %v385 = vsel %vm349, %v341, 0.0
  %v386 = vadd.f32 %v384, %v385
  %v387 = vsel %vm349, %v342, 0.0
  %v388 = vadd.f32 %v386, %v387
  %v389 = vsel %vm349, %v343, 0.0
  %v390 = vadd.f32 %v388, %v389
  %v391 = vsel %vm349, %v344, 0.0
  %v392 = vadd.f32 %v390, %v391
  %v393 = vsel %vm349, %v345, 0.0
  %v394 = vadd.f32 %v392, %v393
  %v395 = vsel %vm349, %v346, 0.0
  %v396 = vadd.f32 %v394, %v395
  %v397 = vsel %vm349, %v347, 0.0
  %v398 = vadd.f32 %v396, %v397
  %v399 = vsel %vm349, %v348, 0.0
  %v400 = vadd.f32 %v398, %v399
  %v401 = vrot.slane %v400, 4
  %v402 = vadd.f32 %v400, %v401
  %v403 = vrot.slane %v402, 2
  %v404 = vadd.f32 %v402, %v403
  %v405 = vrot.slane %v404, 1
  %v406 = vadd.f32 %v404, %v405
  %v407 = vld [vmem:[%s2] sm:$0x1]
  %v408 = vadd.f32 %v406, %v407
  %v409 = vmax.f32 %v408, 0.0
  %v410 = vld [vmem:[%s3] sm:$0xff]
  %v411 = vld [vmem:[%s3 + $0x8] sm:$0xff]
  %v412 = vld [vmem:[%s3 + $0x10] sm:$0xff]
  %v413 = vld [vmem:[%s3 + $0x18] sm:$0xff]
  %v414 = vld [vmem:[%s3 + $0x20] sm:$0xff]
  %v415 = vld [vmem:[%s3 + $0x28] sm:$0xff]
  %v416 = vld [vmem:[%s3 + $0x30] sm:$0xff]
  %v417 = vld [vmem:[%s3 + $0x38] sm:$0xff]
  %v418 = vld [vmem:[%s3 + $0x40] sm:$0xff]
  %v419 = vld [vmem:[%s3 + $0x48] sm:$0xff]
  %v420 = vld [vmem:[%s3 + $0x50] sm:$0xff]
  %v421 = vld [vmem:[%s3 + $0x58] sm:$0xff]
  %v422 = vld [vmem:[%s3 + $0x60] sm:$0xff]
  %v423 = vld [vmem:[%s3 + $0x68] sm:$0xff]
  %v424 = vld [vmem:[%s3 + $0x70] sm:$0xff]
  %v425 = vld [vmem:[%s3 + $0x78] sm:$0xff]
  %v426 = vld [vmem:[%s3 + $0x80] sm:$0xff]
  %v427 = vld [vmem:[%s3 + $0x88] sm:$0xff]
  %v428 = vld [vmem:[%s3 + $0x90] sm:$0xff]
  %v429 = vld [vmem:[%s3 + $0x98] sm:$0xff]
  %v430 = vld [vmem:[%s3 + $0xa0] sm:$0xff]
  %v431 = vld [vmem:[%s3 + $0xa8] sm:$0xff]
  %v432 = vld [vmem:[%s3 + $0xb0] sm:$0xff]
  %v433 = vld [vmem:[%s3 + $0xb8] sm:$0xff]
  %v434 = vld [vmem:[%s3 + $0xc0] sm:$0xff]
  %v435 = vld [vmem:[%s3 + $0xc8] sm:$0xff]
  %v436 = vperm.slane %v409, 0
  %v437 = vmul.f32 %v410, %v436
  %v438 = vmul.f32 %v411, %v436
  %v439 = vmul.f32 %v412, %v436
  %v440 = vmul.f32 %v413, %v436
  %v441 = vmul.f32 %v414, %v436
  %v442 = vmul.f32 %v415, %v436
  %v443 = vmul.f32 %v416, %v436
  %v444 = vmul.f32 %v417, %v436
  %v445 = vmul.f32 %v418, %v436
  %v446 = vmul.f32 %v419, %v436
  %v447 = vmul.f32 %v420, %v436
  %v448 = vmul.f32 %v421, %v436
  %v449 = vmul.f32 %v422, %v436
  %v450 = vmul.f32 %v423, %v436
  %v451 = vmul.f32 %v424, %v436
  %v452 = vmul.f32 %v425, %v436
  %v453 = vmul.f32 %v426, %v436
  %v454 = vmul.f32 %v427, %v436
  %v455 = vmul.f32 %v428, %v436
  %v456 = vmul.f32 %v429, %v436
  %v457 = vmul.f32 %v430, %v436
  %v458 = vmul.f32 %v431, %v436
  %v459 = vmul.f32 %v432, %v436
  %v460 = vmul.f32 %v433, %v436
  %v461 = vmul.f32 %v434, %v436
  %v462 = vmul.f32 %v435, %v436
  %v463 = vsel %vm349, %v437, 0.0
  %464 = vadd.xlane.f32.xlu0 %v463
  %v465 = vpop.xlane.xlu0 %464
  %v466 = vsel %vm349, %v438, 0.0
  %467 = vadd.xlane.f32.xlu0 %v466
  %v468 = vpop.xlane.xlu0 %467
  %v469 = vsel %vm349, %v439, 0.0
  %470 = vadd.xlane.f32.xlu0 %v469
  %v471 = vpop.xlane.xlu0 %470
  %v472 = vsel %vm349, %v440, 0.0
  %473 = vadd.xlane.f32.xlu0 %v472
  %v474 = vpop.xlane.xlu0 %473
  %v475 = vsel %vm349, %v441, 0.0
  %476 = vadd.xlane.f32.xlu0 %v475
  %v477 = vpop.xlane.xlu0 %476
  %v478 = vsel %vm349, %v442, 0.0
  %479 = vadd.xlane.f32.xlu0 %v478
  %v480 = vpop.xlane.xlu0 %479
  %v481 = vsel %vm349, %v443, 0.0
  %482 = vadd.xlane.f32.xlu0 %v481
  %v483 = vpop.xlane.xlu0 %482
  %v484 = vsel %vm349, %v444, 0.0
  %485 = vadd.xlane.f32.xlu0 %v484
  %v486 = vpop.xlane.xlu0 %485
  %v487 = vsel %vm349, %v445, 0.0
  %488 = vadd.xlane.f32.xlu0 %v487
  %v489 = vpop.xlane.xlu0 %488
  %v490 = vsel %vm349, %v446, 0.0
  %491 = vadd.xlane.f32.xlu0 %v490
  %v492 = vpop.xlane.xlu0 %491
  %v493 = vsel %vm349, %v447, 0.0
  %494 = vadd.xlane.f32.xlu0 %v493
  %v495 = vpop.xlane.xlu0 %494
  %v496 = vsel %vm349, %v448, 0.0
  %497 = vadd.xlane.f32.xlu0 %v496
  %v498 = vpop.xlane.xlu0 %497
  %v499 = vsel %vm349, %v449, 0.0
  %500 = vadd.xlane.f32.xlu0 %v499
  %v501 = vpop.xlane.xlu0 %500
  %v502 = vsel %vm349, %v450, 0.0
  %503 = vadd.xlane.f32.xlu0 %v502
  %v504 = vpop.xlane.xlu0 %503
  %v505 = vsel %vm349, %v451, 0.0
  %506 = vadd.xlane.f32.xlu0 %v505
  %v507 = vpop.xlane.xlu0 %506
  %v508 = vsel %vm349, %v452, 0.0
  %509 = vadd.xlane.f32.xlu0 %v508
  %v510 = vpop.xlane.xlu0 %509
  %v511 = vsel %vm349, %v453, 0.0
  %512 = vadd.xlane.f32.xlu0 %v511
  %v513 = vpop.xlane.xlu0 %512
  %v514 = vsel %vm349, %v454, 0.0
  %515 = vadd.xlane.f32.xlu0 %v514
  %v516 = vpop.xlane.xlu0 %515
  %v517 = vsel %vm349, %v455, 0.0
  %518 = vadd.xlane.f32.xlu0 %v517
  %v519 = vpop.xlane.xlu0 %518
  %v520 = vsel %vm349, %v456, 0.0
  %521 = vadd.xlane.f32.xlu0 %v520
  %v522 = vpop.xlane.xlu0 %521
  %v523 = vsel %vm349, %v457, 0.0
  %524 = vadd.xlane.f32.xlu0 %v523
  %v525 = vpop.xlane.xlu0 %524
  %v526 = vsel %vm349, %v458, 0.0
  %527 = vadd.xlane.f32.xlu0 %v526
  %v528 = vpop.xlane.xlu0 %527
  %v529 = vsel %vm349, %v459, 0.0
  %530 = vadd.xlane.f32.xlu0 %v529
  %v531 = vpop.xlane.xlu0 %530
  %v532 = vsel %vm349, %v460, 0.0
  %533 = vadd.xlane.f32.xlu0 %v532
  %v534 = vpop.xlane.xlu0 %533
  %v535 = vsel %vm349, %v461, 0.0
  %536 = vadd.xlane.f32.xlu0 %v535
  %v537 = vpop.xlane.xlu0 %536
  %v538 = vsel %vm349, %v462, 0.0
  %539 = vadd.xlane.f32.xlu0 %v538
  %v540 = vpop.xlane.xlu0 %539
  %v541 = vld [vmem:[%s4] sm:$0xff]
  %v542 = vld [vmem:[%s4 + $0x8] sm:$0xff]
  %v543 = vld [vmem:[%s4 + $0x10] sm:$0xff]
  %v544 = vld [vmem:[%s4 + $0x18] sm:$0xff]
  %v545 = vld [vmem:[%s4 + $0x20] sm:$0xff]
  %v546 = vld [vmem:[%s4 + $0x28] sm:$0xff]
  %v547 = vld [vmem:[%s4 + $0x30] sm:$0xff]
  %v548 = vld [vmem:[%s4 + $0x38] sm:$0xff]
  %v549 = vld [vmem:[%s4 + $0x40] sm:$0xff]
  %v550 = vld [vmem:[%s4 + $0x48] sm:$0xff]
  %v551 = vld [vmem:[%s4 + $0x50] sm:$0xff]
  %v552 = vld [vmem:[%s4 + $0x58] sm:$0xff]
  %v553 = vld [vmem:[%s4 + $0x60] sm:$0xff]
  %v554 = vld [vmem:[%s4 + $0x68] sm:$0xff]
  %v555 = vld [vmem:[%s4 + $0x70] sm:$0xff]
  %v556 = vld [vmem:[%s4 + $0x78] sm:$0xff]
  %v557 = vld [vmem:[%s4 + $0x80] sm:$0xff]
  %v558 = vld [vmem:[%s4 + $0x88] sm:$0xff]
  %v559 = vld [vmem:[%s4 + $0x90] sm:$0xff]
  %v560 = vld [vmem:[%s4 + $0x98] sm:$0xff]
  %v561 = vld [vmem:[%s4 + $0xa0] sm:$0xff]
  %v562 = vld [vmem:[%s4 + $0xa8] sm:$0xff]
  %v563 = vld [vmem:[%s4 + $0xb0] sm:$0xff]
  %v564 = vld [vmem:[%s4 + $0xb8] sm:$0xff]
  %v565 = vld [vmem:[%s4 + $0xc0] sm:$0xff]
  %v566 = vld [vmem:[%s4 + $0xc8] sm:$0xff]
  %v567 = vadd.f32 %v465, %v541
  %v568 = vadd.f32 %v468, %v542
  %v569 = vadd.f32 %v471, %v543
  %v570 = vadd.f32 %v474, %v544
  %v571 = vadd.f32 %v477, %v545
  %v572 = vadd.f32 %v480, %v546
  %v573 = vadd.f32 %v483, %v547
  %v574 = vadd.f32 %v486, %v548
  %v575 = vadd.f32 %v489, %v549
  %v576 = vadd.f32 %v492, %v550
  %v577 = vadd.f32 %v495, %v551
  %v578 = vadd.f32 %v498, %v552
  %v579 = vadd.f32 %v501, %v553
  %v580 = vadd.f32 %v504, %v554
  %v581 = vadd.f32 %v507, %v555
  %v582 = vadd.f32 %v510, %v556
  %v583 = vadd.f32 %v513, %v557
  %v584 = vadd.f32 %v516, %v558
  %v585 = vadd.f32 %v519, %v559
  %v586 = vadd.f32 %v522, %v560
  %v587 = vadd.f32 %v525, %v561
  %v588 = vadd.f32 %v528, %v562
  %v589 = vadd.f32 %v531, %v563
  %v590 = vadd.f32 %v534, %v564
  %v591 = vadd.f32 %v537, %v565
  %v592 = vadd.f32 %v540, %v566
  %v593 = vxor.u32 %v567, 2147483648
  %v594 = vxor.u32 %v568, 2147483648
  %v595 = vxor.u32 %v569, 2147483648
  %v596 = vxor.u32 %v570, 2147483648
  %v597 = vxor.u32 %v571, 2147483648
  %v598 = vxor.u32 %v572, 2147483648
  %v599 = vxor.u32 %v573, 2147483648
  %v600 = vxor.u32 %v574, 2147483648
  %v601 = vxor.u32 %v575, 2147483648
  %v602 = vxor.u32 %v576, 2147483648
  %v603 = vxor.u32 %v577, 2147483648
  %v604 = vxor.u32 %v578, 2147483648
  %v605 = vxor.u32 %v579, 2147483648
  %v606 = vxor.u32 %v580, 2147483648
  %v607 = vxor.u32 %v581, 2147483648
  %v608 = vxor.u32 %v582, 2147483648
  %v609 = vxor.u32 %v583, 2147483648
  %v610 = vxor.u32 %v584, 2147483648
  %v611 = vxor.u32 %v585, 2147483648
  %v612 = vxor.u32 %v586, 2147483648
  %v613 = vxor.u32 %v587, 2147483648
  %v614 = vxor.u32 %v588, 2147483648
  %v615 = vxor.u32 %v589, 2147483648
  %v616 = vxor.u32 %v590, 2147483648
  %v617 = vxor.u32 %v591, 2147483648
  %v618 = vxor.u32 %v592, 2147483648
  %v619 = vmul.f32 %v593, 1.442695
  %v620 = vpow.pop %v619
  %v621 = vmul.f32 %v594, 1.442695
  %v622 = vpow.pop %v621
  %v623 = vmul.f32 %v595, 1.442695
  %v624 = vpow.pop %v623
  %v625 = vmul.f32 %v596, 1.442695
  %v626 = vpow.pop %v625
  %v627 = vmul.f32 %v597, 1.442695
  %v628 = vpow.pop %v627
  %v629 = vmul.f32 %v598, 1.442695
  %v630 = vpow.pop %v629
  %v631 = vmul.f32 %v599, 1.442695
  %v632 = vpow.pop %v631
  %v633 = vmul.f32 %v600, 1.442695
  %v634 = vpow.pop %v633
  %v635 = vmul.f32 %v601, 1.442695
  %v636 = vpow.pop %v635
  %v637 = vmul.f32 %v602, 1.442695
  %v638 = vpow.pop %v637
  %v639 = vmul.f32 %v603, 1.442695
  %v640 = vpow.pop %v639
  %v641 = vmul.f32 %v604, 1.442695
  %v642 = vpow.pop %v641
  %v643 = vmul.f32 %v605, 1.442695
  %v644 = vpow.pop %v643
  %v645 = vmul.f32 %v606, 1.442695
  %v646 = vpow.pop %v645
  %v647 = vmul.f32 %v607, 1.442695
  %v648 = vpow.pop %v647
  %v649 = vmul.f32 %v608, 1.442695
  %v650 = vpow.pop %v649
  %v651 = vmul.f32 %v609, 1.442695
  %v652 = vpow.pop %v651
  %v653 = vmul.f32 %v610, 1.442695
  %v654 = vpow.pop %v653
  %v655 = vmul.f32 %v611, 1.442695
  %v656 = vpow.pop %v655
  %v657 = vmul.f32 %v612, 1.442695
  %v658 = vpow.pop %v657
  %v659 = vmul.f32 %v613, 1.442695
  %v660 = vpow.pop %v659
  %v661 = vmul.f32 %v614, 1.442695
  %v662 = vpow.pop %v661
  %v663 = vmul.f32 %v615, 1.442695
  %v664 = vpow.pop %v663
  %v665 = vmul.f32 %v616, 1.442695
  %v666 = vpow.pop %v665
  %v667 = vmul.f32 %v617, 1.442695
  %v668 = vpow.pop %v667
  %v669 = vmul.f32 %v618, 1.442695
  %v670 = vpow.pop %v669
  %v671 = vadd.f32 %v620, 1.0
  %v672 = vadd.f32 %v622, 1.0
  %v673 = vadd.f32 %v624, 1.0
  %v674 = vadd.f32 %v626, 1.0
  %v675 = vadd.f32 %v628, 1.0
  %v676 = vadd.f32 %v630, 1.0
  %v677 = vadd.f32 %v632, 1.0
  %v678 = vadd.f32 %v634, 1.0
  %v679 = vadd.f32 %v636, 1.0
  %v680 = vadd.f32 %v638, 1.0
  %v681 = vadd.f32 %v640, 1.0
  %v682 = vadd.f32 %v642, 1.0
  %v683 = vadd.f32 %v644, 1.0
  %v684 = vadd.f32 %v646, 1.0
  %v685 = vadd.f32 %v648, 1.0
  %v686 = vadd.f32 %v650, 1.0
  %v687 = vadd.f32 %v652, 1.0
  %v688 = vadd.f32 %v654, 1.0
  %v689 = vadd.f32 %v656, 1.0
  %v690 = vadd.f32 %v658, 1.0
  %v691 = vadd.f32 %v660, 1.0
  %v692 = vadd.f32 %v662, 1.0
  %v693 = vadd.f32 %v664, 1.0
  %v694 = vadd.f32 %v666, 1.0
  %v695 = vadd.f32 %v668, 1.0
  %v696 = vadd.f32 %v670, 1.0
  %v697 = vrcp.pop %v671
  %v698 = vmul.f32 %v671, %v697
  %v699 = vsub.f32 1.0, %v698
  %v700 = vmul.f32 %v697, %v699
  %v701 = vadd.f32 %v697, %v700
  %vm702 = vweird.f32 %v671
  %vm703 = vweird.f32 %v697
  %vm704 = vmor %vm702, %vm703
  %v705 = vsel %vm704, %v697, %v701
  %v706 = vand.u32 2147483647, %v671
  %vm707 = vcmp.eq.f32.partialorder %v706, 8.507059e+37
  %v708 = vand.u32 %v671, 2147483648
  %v709 = vor.u32 1.1754944e-38, %v708
  %v710 = vsel %vm707, %v709, %v705
  %v711 = vmul.f32 1.0, %v710
  %v712 = vrcp.pop %v672
  %v713 = vmul.f32 %v672, %v712
  %v714 = vsub.f32 1.0, %v713
  %v715 = vmul.f32 %v712, %v714
  %v716 = vadd.f32 %v712, %v715
  %vm717 = vweird.f32 %v672
  %vm718 = vweird.f32 %v712
  %vm719 = vmor %vm717, %vm718
  %v720 = vsel %vm719, %v712, %v716
  %v721 = vand.u32 2147483647, %v672
  %vm722 = vcmp.eq.f32.partialorder %v721, 8.507059e+37
  %v723 = vand.u32 %v672, 2147483648
  %v724 = vor.u32 1.1754944e-38, %v723
  %v725 = vsel %vm722, %v724, %v720
  %v726 = vmul.f32 1.0, %v725
  %v727 = vrcp.pop %v673
  %v728 = vmul.f32 %v673, %v727
  %v729 = vsub.f32 1.0, %v728
  %v730 = vmul.f32 %v727, %v729
  %v731 = vadd.f32 %v727, %v730
  %vm732 = vweird.f32 %v673
  %vm733 = vweird.f32 %v727
  %vm734 = vmor %vm732, %vm733
  %v735 = vsel %vm734, %v727, %v731
  %v736 = vand.u32 2147483647, %v673
  %vm737 = vcmp.eq.f32.partialorder %v736, 8.507059e+37
  %v738 = vand.u32 %v673, 2147483648
  %v739 = vor.u32 1.1754944e-38, %v738
  %v740 = vsel %vm737, %v739, %v735
  %v741 = vmul.f32 1.0, %v740
  %v742 = vrcp.pop %v674
  %v743 = vmul.f32 %v674, %v742
  %v744 = vsub.f32 1.0, %v743
  %v745 = vmul.f32 %v742, %v744
  %v746 = vadd.f32 %v742, %v745
  %vm747 = vweird.f32 %v674
  %vm748 = vweird.f32 %v742
  %vm749 = vmor %vm747, %vm748
  %v750 = vsel %vm749, %v742, %v746
  %v751 = vand.u32 2147483647, %v674
  %vm752 = vcmp.eq.f32.partialorder %v751, 8.507059e+37
  %v753 = vand.u32 %v674, 2147483648
  %v754 = vor.u32 1.1754944e-38, %v753
  %v755 = vsel %vm752, %v754, %v750
  %v756 = vmul.f32 1.0, %v755
  %v757 = vrcp.pop %v675
  %v758 = vmul.f32 %v675, %v757
  %v759 = vsub.f32 1.0, %v758
  %v760 = vmul.f32 %v757, %v759
  %v761 = vadd.f32 %v757, %v760
  %vm762 = vweird.f32 %v675
  %vm763 = vweird.f32 %v757
  %vm764 = vmor %vm762, %vm763
  %v765 = vsel %vm764, %v757, %v761
  %v766 = vand.u32 2147483647, %v675
  %vm767 = vcmp.eq.f32.partialorder %v766, 8.507059e+37
  %v768 = vand.u32 %v675, 2147483648
  %v769 = vor.u32 1.1754944e-38, %v768
  %v770 = vsel %vm767, %v769, %v765
  %v771 = vmul.f32 1.0, %v770
  %v772 = vrcp.pop %v676
  %v773 = vmul.f32 %v676, %v772
  %v774 = vsub.f32 1.0, %v773
  %v775 = vmul.f32 %v772, %v774
  %v776 = vadd.f32 %v772, %v775
  %vm777 = vweird.f32 %v676
  %vm778 = vweird.f32 %v772
  %vm779 = vmor %vm777, %vm778
  %v780 = vsel %vm779, %v772, %v776
  %v781 = vand.u32 2147483647, %v676
  %vm782 = vcmp.eq.f32.partialorder %v781, 8.507059e+37
  %v783 = vand.u32 %v676, 2147483648
  %v784 = vor.u32 1.1754944e-38, %v783
  %v785 = vsel %vm782, %v784, %v780
  %v786 = vmul.f32 1.0, %v785
  %v787 = vrcp.pop %v677
  %v788 = vmul.f32 %v677, %v787
  %v789 = vsub.f32 1.0, %v788
  %v790 = vmul.f32 %v787, %v789
  %v791 = vadd.f32 %v787, %v790
  %vm792 = vweird.f32 %v677
  %vm793 = vweird.f32 %v787
  %vm794 = vmor %vm792, %vm793
  %v795 = vsel %vm794, %v787, %v791
  %v796 = vand.u32 2147483647, %v677
  %vm797 = vcmp.eq.f32.partialorder %v796, 8.507059e+37
  %v798 = vand.u32 %v677, 2147483648
  %v799 = vor.u32 1.1754944e-38, %v798
  %v800 = vsel %vm797, %v799, %v795
  %v801 = vmul.f32 1.0, %v800
  %v802 = vrcp.pop %v678
  %v803 = vmul.f32 %v678, %v802
  %v804 = vsub.f32 1.0, %v803
  %v805 = vmul.f32 %v802, %v804
  %v806 = vadd.f32 %v802, %v805
  %vm807 = vweird.f32 %v678
  %vm808 = vweird.f32 %v802
  %vm809 = vmor %vm807, %vm808
  %v810 = vsel %vm809, %v802, %v806
  %v811 = vand.u32 2147483647, %v678
  %vm812 = vcmp.eq.f32.partialorder %v811, 8.507059e+37
  %v813 = vand.u32 %v678, 2147483648
  %v814 = vor.u32 1.1754944e-38, %v813
  %v815 = vsel %vm812, %v814, %v810
  %v816 = vmul.f32 1.0, %v815
  %v817 = vrcp.pop %v679
  %v818 = vmul.f32 %v679, %v817
  %v819 = vsub.f32 1.0, %v818
  %v820 = vmul.f32 %v817, %v819
  %v821 = vadd.f32 %v817, %v820
  %vm822 = vweird.f32 %v679
  %vm823 = vweird.f32 %v817
  %vm824 = vmor %vm822, %vm823
  %v825 = vsel %vm824, %v817, %v821
  %v826 = vand.u32 2147483647, %v679
  %vm827 = vcmp.eq.f32.partialorder %v826, 8.507059e+37
  %v828 = vand.u32 %v679, 2147483648
  %v829 = vor.u32 1.1754944e-38, %v828
  %v830 = vsel %vm827, %v829, %v825
  %v831 = vmul.f32 1.0, %v830
  %v832 = vrcp.pop %v680
  %v833 = vmul.f32 %v680, %v832
  %v834 = vsub.f32 1.0, %v833
  %v835 = vmul.f32 %v832, %v834
  %v836 = vadd.f32 %v832, %v835
  %vm837 = vweird.f32 %v680
  %vm838 = vweird.f32 %v832
  %vm839 = vmor %vm837, %vm838
  %v840 = vsel %vm839, %v832, %v836
  %v841 = vand.u32 2147483647, %v680
  %vm842 = vcmp.eq.f32.partialorder %v841, 8.507059e+37
  %v843 = vand.u32 %v680, 2147483648
  %v844 = vor.u32 1.1754944e-38, %v843
  %v845 = vsel %vm842, %v844, %v840
  %v846 = vmul.f32 1.0, %v845
  %v847 = vrcp.pop %v681
  %v848 = vmul.f32 %v681, %v847
  %v849 = vsub.f32 1.0, %v848
  %v850 = vmul.f32 %v847, %v849
  %v851 = vadd.f32 %v847, %v850
  %vm852 = vweird.f32 %v681
  %vm853 = vweird.f32 %v847
  %vm854 = vmor %vm852, %vm853
  %v855 = vsel %vm854, %v847, %v851
  %v856 = vand.u32 2147483647, %v681
  %vm857 = vcmp.eq.f32.partialorder %v856, 8.507059e+37
  %v858 = vand.u32 %v681, 2147483648
  %v859 = vor.u32 1.1754944e-38, %v858
  %v860 = vsel %vm857, %v859, %v855
  %v861 = vmul.f32 1.0, %v860
  %v862 = vrcp.pop %v682
  %v863 = vmul.f32 %v682, %v862
  %v864 = vsub.f32 1.0, %v863
  %v865 = vmul.f32 %v862, %v864
  %v866 = vadd.f32 %v862, %v865
  %vm867 = vweird.f32 %v682
  %vm868 = vweird.f32 %v862
  %vm869 = vmor %vm867, %vm868
  %v870 = vsel %vm869, %v862, %v866
  %v871 = vand.u32 2147483647, %v682
  %vm872 = vcmp.eq.f32.partialorder %v871, 8.507059e+37
  %v873 = vand.u32 %v682, 2147483648
  %v874 = vor.u32 1.1754944e-38, %v873
  %v875 = vsel %vm872, %v874, %v870
  %v876 = vmul.f32 1.0, %v875
  %v877 = vrcp.pop %v683
  %v878 = vmul.f32 %v683, %v877
  %v879 = vsub.f32 1.0, %v878
  %v880 = vmul.f32 %v877, %v879
  %v881 = vadd.f32 %v877, %v880
  %vm882 = vweird.f32 %v683
  %vm883 = vweird.f32 %v877
  %vm884 = vmor %vm882, %vm883
  %v885 = vsel %vm884, %v877, %v881
  %v886 = vand.u32 2147483647, %v683
  %vm887 = vcmp.eq.f32.partialorder %v886, 8.507059e+37
  %v888 = vand.u32 %v683, 2147483648
  %v889 = vor.u32 1.1754944e-38, %v888
  %v890 = vsel %vm887, %v889, %v885
  %v891 = vmul.f32 1.0, %v890
  %v892 = vrcp.pop %v684
  %v893 = vmul.f32 %v684, %v892
  %v894 = vsub.f32 1.0, %v893
  %v895 = vmul.f32 %v892, %v894
  %v896 = vadd.f32 %v892, %v895
  %vm897 = vweird.f32 %v684
  %vm898 = vweird.f32 %v892
  %vm899 = vmor %vm897, %vm898
  %v900 = vsel %vm899, %v892, %v896
  %v901 = vand.u32 2147483647, %v684
  %vm902 = vcmp.eq.f32.partialorder %v901, 8.507059e+37
  %v903 = vand.u32 %v684, 2147483648
  %v904 = vor.u32 1.1754944e-38, %v903
  %v905 = vsel %vm902, %v904, %v900
  %v906 = vmul.f32 1.0, %v905
  %v907 = vrcp.pop %v685
  %v908 = vmul.f32 %v685, %v907
  %v909 = vsub.f32 1.0, %v908
  %v910 = vmul.f32 %v907, %v909
  %v911 = vadd.f32 %v907, %v910
  %vm912 = vweird.f32 %v685
  %vm913 = vweird.f32 %v907
  %vm914 = vmor %vm912, %vm913
  %v915 = vsel %vm914, %v907, %v911
  %v916 = vand.u32 2147483647, %v685
  %vm917 = vcmp.eq.f32.partialorder %v916, 8.507059e+37
  %v918 = vand.u32 %v685, 2147483648
  %v919 = vor.u32 1.1754944e-38, %v918
  %v920 = vsel %vm917, %v919, %v915
  %v921 = vmul.f32 1.0, %v920
  %v922 = vrcp.pop %v686
  %v923 = vmul.f32 %v686, %v922
  %v924 = vsub.f32 1.0, %v923
  %v925 = vmul.f32 %v922, %v924
  %v926 = vadd.f32 %v922, %v925
  %vm927 = vweird.f32 %v686
  %vm928 = vweird.f32 %v922
  %vm929 = vmor %vm927, %vm928
  %v930 = vsel %vm929, %v922, %v926
  %v931 = vand.u32 2147483647, %v686
  %vm932 = vcmp.eq.f32.partialorder %v931, 8.507059e+37
  %v933 = vand.u32 %v686, 2147483648
  %v934 = vor.u32 1.1754944e-38, %v933
  %v935 = vsel %vm932, %v934, %v930
  %v936 = vmul.f32 1.0, %v935
  %v937 = vrcp.pop %v687
  %v938 = vmul.f32 %v687, %v937
  %v939 = vsub.f32 1.0, %v938
  %v940 = vmul.f32 %v937, %v939
  %v941 = vadd.f32 %v937, %v940
  %vm942 = vweird.f32 %v687
  %vm943 = vweird.f32 %v937
  %vm944 = vmor %vm942, %vm943
  %v945 = vsel %vm944, %v937, %v941
  %v946 = vand.u32 2147483647, %v687
  %vm947 = vcmp.eq.f32.partialorder %v946, 8.507059e+37
  %v948 = vand.u32 %v687, 2147483648
  %v949 = vor.u32 1.1754944e-38, %v948
  %v950 = vsel %vm947, %v949, %v945
  %v951 = vmul.f32 1.0, %v950
  %v952 = vrcp.pop %v688
  %v953 = vmul.f32 %v688, %v952
  %v954 = vsub.f32 1.0, %v953
  %v955 = vmul.f32 %v952, %v954
  %v956 = vadd.f32 %v952, %v955
  %vm957 = vweird.f32 %v688
  %vm958 = vweird.f32 %v952
  %vm959 = vmor %vm957, %vm958
  %v960 = vsel %vm959, %v952, %v956
  %v961 = vand.u32 2147483647, %v688
  %vm962 = vcmp.eq.f32.partialorder %v961, 8.507059e+37
  %v963 = vand.u32 %v688, 2147483648
  %v964 = vor.u32 1.1754944e-38, %v963
  %v965 = vsel %vm962, %v964, %v960
  %v966 = vmul.f32 1.0, %v965
  %v967 = vrcp.pop %v689
  %v968 = vmul.f32 %v689, %v967
  %v969 = vsub.f32 1.0, %v968
  %v970 = vmul.f32 %v967, %v969
  %v971 = vadd.f32 %v967, %v970
  %vm972 = vweird.f32 %v689
  %vm973 = vweird.f32 %v967
  %vm974 = vmor %vm972, %vm973
  %v975 = vsel %vm974, %v967, %v971
  %v976 = vand.u32 2147483647, %v689
  %vm977 = vcmp.eq.f32.partialorder %v976, 8.507059e+37
  %v978 = vand.u32 %v689, 2147483648
  %v979 = vor.u32 1.1754944e-38, %v978
  %v980 = vsel %vm977, %v979, %v975
  %v981 = vmul.f32 1.0, %v980
  %v982 = vrcp.pop %v690
  %v983 = vmul.f32 %v690, %v982
  %v984 = vsub.f32 1.0, %v983
  %v985 = vmul.f32 %v982, %v984
  %v986 = vadd.f32 %v982, %v985
  %vm987 = vweird.f32 %v690
  %vm988 = vweird.f32 %v982
  %vm989 = vmor %vm987, %vm988
  %v990 = vsel %vm989, %v982, %v986
  %v991 = vand.u32 2147483647, %v690
  %vm992 = vcmp.eq.f32.partialorder %v991, 8.507059e+37
  %v993 = vand.u32 %v690, 2147483648
  %v994 = vor.u32 1.1754944e-38, %v993
  %v995 = vsel %vm992, %v994, %v990
  %v996 = vmul.f32 1.0, %v995
  %v997 = vrcp.pop %v691
  %v998 = vmul.f32 %v691, %v997
  %v999 = vsub.f32 1.0, %v998
  %v1000 = vmul.f32 %v997, %v999
  %v1001 = vadd.f32 %v997, %v1000
  %vm1002 = vweird.f32 %v691
  %vm1003 = vweird.f32 %v997
  %vm1004 = vmor %vm1002, %vm1003
  %v1005 = vsel %vm1004, %v997, %v1001
  %v1006 = vand.u32 2147483647, %v691
  %vm1007 = vcmp.eq.f32.partialorder %v1006, 8.507059e+37
  %v1008 = vand.u32 %v691, 2147483648
  %v1009 = vor.u32 1.1754944e-38, %v1008
  %v1010 = vsel %vm1007, %v1009, %v1005
  %v1011 = vmul.f32 1.0, %v1010
  %v1012 = vrcp.pop %v692
  %v1013 = vmul.f32 %v692, %v1012
  %v1014 = vsub.f32 1.0, %v1013
  %v1015 = vmul.f32 %v1012, %v1014
  %v1016 = vadd.f32 %v1012, %v1015
  %vm1017 = vweird.f32 %v692
  %vm1018 = vweird.f32 %v1012
  %vm1019 = vmor %vm1017, %vm1018
  %v1020 = vsel %vm1019, %v1012, %v1016
  %v1021 = vand.u32 2147483647, %v692
  %vm1022 = vcmp.eq.f32.partialorder %v1021, 8.507059e+37
  %v1023 = vand.u32 %v692, 2147483648
  %v1024 = vor.u32 1.1754944e-38, %v1023
  %v1025 = vsel %vm1022, %v1024, %v1020
  %v1026 = vmul.f32 1.0, %v1025
  %v1027 = vrcp.pop %v693
  %v1028 = vmul.f32 %v693, %v1027
  %v1029 = vsub.f32 1.0, %v1028
  %v1030 = vmul.f32 %v1027, %v1029
  %v1031 = vadd.f32 %v1027, %v1030
  %vm1032 = vweird.f32 %v693
  %vm1033 = vweird.f32 %v1027
  %vm1034 = vmor %vm1032, %vm1033
  %v1035 = vsel %vm1034, %v1027, %v1031
  %v1036 = vand.u32 2147483647, %v693
  %vm1037 = vcmp.eq.f32.partialorder %v1036, 8.507059e+37
  %v1038 = vand.u32 %v693, 2147483648
  %v1039 = vor.u32 1.1754944e-38, %v1038
  %v1040 = vsel %vm1037, %v1039, %v1035
  %v1041 = vmul.f32 1.0, %v1040
  %v1042 = vrcp.pop %v694
  %v1043 = vmul.f32 %v694, %v1042
  %v1044 = vsub.f32 1.0, %v1043
  %v1045 = vmul.f32 %v1042, %v1044
  %v1046 = vadd.f32 %v1042, %v1045
  %vm1047 = vweird.f32 %v694
  %vm1048 = vweird.f32 %v1042
  %vm1049 = vmor %vm1047, %vm1048
  %v1050 = vsel %vm1049, %v1042, %v1046
  %v1051 = vand.u32 2147483647, %v694
  %vm1052 = vcmp.eq.f32.partialorder %v1051, 8.507059e+37
  %v1053 = vand.u32 %v694, 2147483648
  %v1054 = vor.u32 1.1754944e-38, %v1053
  %v1055 = vsel %vm1052, %v1054, %v1050
  %v1056 = vmul.f32 1.0, %v1055
  %v1057 = vrcp.pop %v695
  %v1058 = vmul.f32 %v695, %v1057
  %v1059 = vsub.f32 1.0, %v1058
  %v1060 = vmul.f32 %v1057, %v1059
  %v1061 = vadd.f32 %v1057, %v1060
  %vm1062 = vweird.f32 %v695
  %vm1063 = vweird.f32 %v1057
  %vm1064 = vmor %vm1062, %vm1063
  %v1065 = vsel %vm1064, %v1057, %v1061
  %v1066 = vand.u32 2147483647, %v695
  %vm1067 = vcmp.eq.f32.partialorder %v1066, 8.507059e+37
  %v1068 = vand.u32 %v695, 2147483648
  %v1069 = vor.u32 1.1754944e-38, %v1068
  %v1070 = vsel %vm1067, %v1069, %v1065
  %v1071 = vmul.f32 1.0, %v1070
  %v1072 = vrcp.pop %v696
  %v1073 = vmul.f32 %v696, %v1072
  %v1074 = vsub.f32 1.0, %v1073
  %v1075 = vmul.f32 %v1072, %v1074
  %v1076 = vadd.f32 %v1072, %v1075
  %vm1077 = vweird.f32 %v696
  %vm1078 = vweird.f32 %v1072
  %vm1079 = vmor %vm1077, %vm1078
  %v1080 = vsel %vm1079, %v1072, %v1076
  %v1081 = vand.u32 2147483647, %v696
  %vm1082 = vcmp.eq.f32.partialorder %v1081, 8.507059e+37
  %v1083 = vand.u32 %v696, 2147483648
  %v1084 = vor.u32 1.1754944e-38, %v1083
  %v1085 = vsel %vm1082, %v1084, %v1080
  %v1086 = vmul.f32 1.0, %v1085
  %s1087 = smul.u32 8, 26
  %s1088 = smul.u32 %s1087, 2
  %s1089 = sshll.u32 %s1088, 4
  %1090 = dma.done [#allocation3], %s1089
  %v1091 = vld [vmem:[#allocation2] sm:$0xff]
  %v1092 = vld [vmem:[#allocation2 + $0x8] sm:$0xff]
  %v1093 = vld [vmem:[#allocation2 + $0x10] sm:$0xff]
  %v1094 = vld [vmem:[#allocation2 + $0x18] sm:$0xff]
  %v1095 = vld [vmem:[#allocation2 + $0x20] sm:$0xff]
  %v1096 = vld [vmem:[#allocation2 + $0x28] sm:$0xff]
  %v1097 = vld [vmem:[#allocation2 + $0x30] sm:$0xff]
  %v1098 = vld [vmem:[#allocation2 + $0x38] sm:$0xff]
  %v1099 = vld [vmem:[#allocation2 + $0x40] sm:$0xff]
  %v1100 = vld [vmem:[#allocation2 + $0x48] sm:$0xff]
  %v1101 = vld [vmem:[#allocation2 + $0x50] sm:$0xff]
  %v1102 = vld [vmem:[#allocation2 + $0x58] sm:$0xff]
  %v1103 = vld [vmem:[#allocation2 + $0x60] sm:$0xff]
  %v1104 = vld [vmem:[#allocation2 + $0x68] sm:$0xff]
  %v1105 = vld [vmem:[#allocation2 + $0x70] sm:$0xff]
  %v1106 = vld [vmem:[#allocation2 + $0x78] sm:$0xff]
  %v1107 = vld [vmem:[#allocation2 + $0x80] sm:$0xff]
  %v1108 = vld [vmem:[#allocation2 + $0x88] sm:$0xff]
  %v1109 = vld [vmem:[#allocation2 + $0x90] sm:$0xff]
  %v1110 = vld [vmem:[#allocation2 + $0x98] sm:$0xff]
  %v1111 = vld [vmem:[#allocation2 + $0xa0] sm:$0xff]
  %v1112 = vld [vmem:[#allocation2 + $0xa8] sm:$0xff]
  %v1113 = vld [vmem:[#allocation2 + $0xb0] sm:$0xff]
  %v1114 = vld [vmem:[#allocation2 + $0xb8] sm:$0xff]
  %v1115 = vld [vmem:[#allocation2 + $0xc0] sm:$0xff]
  %v1116 = vld [vmem:[#allocation2 + $0xc8] sm:$0xff]
  %v1117 = vld [vmem:[#allocation2 + $0xd0] sm:$0xff]
  %v1118 = vld [vmem:[#allocation2 + $0xd8] sm:$0xff]
  %v1119 = vld [vmem:[#allocation2 + $0xe0] sm:$0xff]
  %v1120 = vld [vmem:[#allocation2 + $0xe8] sm:$0xff]
  %v1121 = vld [vmem:[#allocation2 + $0xf0] sm:$0xff]
  %v1122 = vld [vmem:[#allocation2 + $0xf8] sm:$0xff]
  %v1123 = vld [vmem:[#allocation2 + $0x100] sm:$0xff]
  %v1124 = vld [vmem:[#allocation2 + $0x108] sm:$0xff]
  %v1125 = vld [vmem:[#allocation2 + $0x110] sm:$0xff]
  %v1126 = vld [vmem:[#allocation2 + $0x118] sm:$0xff]
  %v1127 = vld [vmem:[#allocation2 + $0x120] sm:$0xff]
  %v1128 = vld [vmem:[#allocation2 + $0x128] sm:$0xff]
  %v1129 = vld [vmem:[#allocation2 + $0x130] sm:$0xff]
  %v1130 = vld [vmem:[#allocation2 + $0x138] sm:$0xff]
  %v1131 = vld [vmem:[#allocation2 + $0x140] sm:$0xff]
  %v1132 = vld [vmem:[#allocation2 + $0x148] sm:$0xff]
  %v1133 = vld [vmem:[#allocation2 + $0x150] sm:$0xff]
  %v1134 = vld [vmem:[#allocation2 + $0x158] sm:$0xff]
  %v1135 = vld [vmem:[#allocation2 + $0x160] sm:$0xff]
  %v1136 = vld [vmem:[#allocation2 + $0x168] sm:$0xff]
  %v1137 = vld [vmem:[#allocation2 + $0x170] sm:$0xff]
  %v1138 = vld [vmem:[#allocation2 + $0x178] sm:$0xff]
  %v1139 = vld [vmem:[#allocation2 + $0x180] sm:$0xff]
  %v1140 = vld [vmem:[#allocation2 + $0x188] sm:$0xff]
  %v1141 = vld [vmem:[#allocation2 + $0x190] sm:$0xff]
  %v1142 = vld [vmem:[#allocation2 + $0x198] sm:$0xff]
  %1144 = vset.pattern.permute.xlu0 0
  %1145 = vperm.xlu0 %1144, %v711
  %v1146 = vpop.permute.xlu0 %1145
  %1149 = vset.pattern.permute.xlu0 0
  %1150 = vperm.xlu0 %1149, %v726
  %v1151 = vpop.permute.xlu0 %1150
  %1154 = vset.pattern.permute.xlu0 0
  %1155 = vperm.xlu0 %1154, %v741
  %v1156 = vpop.permute.xlu0 %1155
  %1159 = vset.pattern.permute.xlu0 0
  %1160 = vperm.xlu0 %1159, %v756
  %v1161 = vpop.permute.xlu0 %1160
  %1164 = vset.pattern.permute.xlu0 0
  %1165 = vperm.xlu0 %1164, %v771
  %v1166 = vpop.permute.xlu0 %1165
  %1169 = vset.pattern.permute.xlu0 0
  %1170 = vperm.xlu0 %1169, %v786
  %v1171 = vpop.permute.xlu0 %1170
  %1174 = vset.pattern.permute.xlu0 0
  %1175 = vperm.xlu0 %1174, %v801
  %v1176 = vpop.permute.xlu0 %1175
  %1179 = vset.pattern.permute.xlu0 0
  %1180 = vperm.xlu0 %1179, %v816
  %v1181 = vpop.permute.xlu0 %1180
  %1184 = vset.pattern.permute.xlu0 0
  %1185 = vperm.xlu0 %1184, %v831
  %v1186 = vpop.permute.xlu0 %1185
  %1189 = vset.pattern.permute.xlu0 0
  %1190 = vperm.xlu0 %1189, %v846
  %v1191 = vpop.permute.xlu0 %1190
  %1194 = vset.pattern.permute.xlu0 0
  %1195 = vperm.xlu0 %1194, %v861
  %v1196 = vpop.permute.xlu0 %1195
  %1199 = vset.pattern.permute.xlu0 0
  %1200 = vperm.xlu0 %1199, %v876
  %v1201 = vpop.permute.xlu0 %1200
  %1204 = vset.pattern.permute.xlu0 0
  %1205 = vperm.xlu0 %1204, %v891
  %v1206 = vpop.permute.xlu0 %1205
  %1209 = vset.pattern.permute.xlu0 0
  %1210 = vperm.xlu0 %1209, %v906
  %v1211 = vpop.permute.xlu0 %1210
  %1214 = vset.pattern.permute.xlu0 0
  %1215 = vperm.xlu0 %1214, %v921
  %v1216 = vpop.permute.xlu0 %1215
  %1219 = vset.pattern.permute.xlu0 0
  %1220 = vperm.xlu0 %1219, %v936
  %v1221 = vpop.permute.xlu0 %1220
  %1224 = vset.pattern.permute.xlu0 0
  %1225 = vperm.xlu0 %1224, %v951
  %v1226 = vpop.permute.xlu0 %1225
  %1229 = vset.pattern.permute.xlu0 0
  %1230 = vperm.xlu0 %1229, %v966
  %v1231 = vpop.permute.xlu0 %1230
  %1234 = vset.pattern.permute.xlu0 0
  %1235 = vperm.xlu0 %1234, %v981
  %v1236 = vpop.permute.xlu0 %1235
  %1239 = vset.pattern.permute.xlu0 0
  %1240 = vperm.xlu0 %1239, %v996
  %v1241 = vpop.permute.xlu0 %1240
  %1244 = vset.pattern.permute.xlu0 0
  %1245 = vperm.xlu0 %1244, %v1011
  %v1246 = vpop.permute.xlu0 %1245
  %1249 = vset.pattern.permute.xlu0 0
  %1250 = vperm.xlu0 %1249, %v1026
  %v1251 = vpop.permute.xlu0 %1250
  %1254 = vset.pattern.permute.xlu0 0
  %1255 = vperm.xlu0 %1254, %v1041
  %v1256 = vpop.permute.xlu0 %1255
  %1259 = vset.pattern.permute.xlu0 0
  %1260 = vperm.xlu0 %1259, %v1056
  %v1261 = vpop.permute.xlu0 %1260
  %1264 = vset.pattern.permute.xlu0 0
  %1265 = vperm.xlu0 %1264, %v1071
  %v1266 = vpop.permute.xlu0 %1265
  %1269 = vset.pattern.permute.xlu0 0
  %1270 = vperm.xlu0 %1269, %v1086
  %v1271 = vpop.permute.xlu0 %1270
  %v1273 = vmul.f32 %v1091, %v1146
  %v1274 = vmul.f32 %v1092, %v1146
  %v1275 = vmul.f32 %v1093, %v1151
  %v1276 = vmul.f32 %v1094, %v1151
  %v1277 = vmul.f32 %v1095, %v1156
  %v1278 = vmul.f32 %v1096, %v1156
  %v1279 = vmul.f32 %v1097, %v1161
  %v1280 = vmul.f32 %v1098, %v1161
  %v1281 = vmul.f32 %v1099, %v1166
  %v1282 = vmul.f32 %v1100, %v1166
  %v1283 = vmul.f32 %v1101, %v1171
  %v1284 = vmul.f32 %v1102, %v1171
  %v1285 = vmul.f32 %v1103, %v1176
  %v1286 = vmul.f32 %v1104, %v1176
  %v1287 = vmul.f32 %v1105, %v1181
  %v1288 = vmul.f32 %v1106, %v1181
  %v1289 = vmul.f32 %v1107, %v1186
  %v1290 = vmul.f32 %v1108, %v1186
  %v1291 = vmul.f32 %v1109, %v1191
  %v1292 = vmul.f32 %v1110, %v1191
  %v1293 = vmul.f32 %v1111, %v1196
  %v1294 = vmul.f32 %v1112, %v1196
  %v1295 = vmul.f32 %v1113, %v1201
  %v1296 = vmul.f32 %v1114, %v1201
  %v1297 = vmul.f32 %v1115, %v1206
  %v1298 = vmul.f32 %v1116, %v1206
  %v1299 = vmul.f32 %v1117, %v1211
  %v1300 = vmul.f32 %v1118, %v1211
  %v1301 = vmul.f32 %v1119, %v1216
  %v1302 = vmul.f32 %v1120, %v1216
  %v1303 = vmul.f32 %v1121, %v1221
  %v1304 = vmul.f32 %v1122, %v1221
  %v1305 = vmul.f32 %v1123, %v1226
  %v1306 = vmul.f32 %v1124, %v1226
  %v1307 = vmul.f32 %v1125, %v1231
  %v1308 = vmul.f32 %v1126, %v1231
  %v1309 = vmul.f32 %v1127, %v1236
  %v1310 = vmul.f32 %v1128, %v1236
  %v1311 = vmul.f32 %v1129, %v1241
  %v1312 = vmul.f32 %v1130, %v1241
  %v1313 = vmul.f32 %v1131, %v1246
  %v1314 = vmul.f32 %v1132, %v1246
  %v1315 = vmul.f32 %v1133, %v1251
  %v1316 = vmul.f32 %v1134, %v1251
  %v1317 = vmul.f32 %v1135, %v1256
  %v1318 = vmul.f32 %v1136, %v1256
  %v1319 = vmul.f32 %v1137, %v1261
  %v1320 = vmul.f32 %v1138, %v1261
  %v1321 = vmul.f32 %v1139, %v1266
  %v1322 = vmul.f32 %v1140, %v1266
  %v1323 = vmul.f32 %v1141, %v1271
  %v1324 = vmul.f32 %v1142, %v1271
  %1325 = vst [vmem:[%s6] sm:$0xff] %v1273
  %vm1326 = vcmask 556032
  %1327 = vst.msk [vmem:[%s6 + $0x8] sm:$0xff] %vm1326, %v1274
  %1328 = vst [vmem:[%s6 + $0x10] sm:$0xff] %v1275
  %1329 = vst.msk [vmem:[%s6 + $0x18] sm:$0xff] %vm1326, %v1276
  %1330 = vst [vmem:[%s6 + $0x20] sm:$0xff] %v1277
  %1331 = vst.msk [vmem:[%s6 + $0x28] sm:$0xff] %vm1326, %v1278
  %1332 = vst [vmem:[%s6 + $0x30] sm:$0xff] %v1279
  %1333 = vst.msk [vmem:[%s6 + $0x38] sm:$0xff] %vm1326, %v1280
  %1334 = vst [vmem:[%s6 + $0x40] sm:$0xff] %v1281
  %1335 = vst.msk [vmem:[%s6 + $0x48] sm:$0xff] %vm1326, %v1282
  %1336 = vst [vmem:[%s6 + $0x50] sm:$0xff] %v1283
  %1337 = vst.msk [vmem:[%s6 + $0x58] sm:$0xff] %vm1326, %v1284
  %1338 = vst [vmem:[%s6 + $0x60] sm:$0xff] %v1285
  %1339 = vst.msk [vmem:[%s6 + $0x68] sm:$0xff] %vm1326, %v1286
  %1340 = vst [vmem:[%s6 + $0x70] sm:$0xff] %v1287
  %1341 = vst.msk [vmem:[%s6 + $0x78] sm:$0xff] %vm1326, %v1288
  %1342 = vst [vmem:[%s6 + $0x80] sm:$0xff] %v1289
  %1343 = vst.msk [vmem:[%s6 + $0x88] sm:$0xff] %vm1326, %v1290
  %1344 = vst [vmem:[%s6 + $0x90] sm:$0xff] %v1291
  %1345 = vst.msk [vmem:[%s6 + $0x98] sm:$0xff] %vm1326, %v1292
  %1346 = vst [vmem:[%s6 + $0xa0] sm:$0xff] %v1293
  %1347 = vst.msk [vmem:[%s6 + $0xa8] sm:$0xff] %vm1326, %v1294
  %1348 = vst [vmem:[%s6 + $0xb0] sm:$0xff] %v1295
  %1349 = vst.msk [vmem:[%s6 + $0xb8] sm:$0xff] %vm1326, %v1296
  %1350 = vst [vmem:[%s6 + $0xc0] sm:$0xff] %v1297
  %1351 = vst.msk [vmem:[%s6 + $0xc8] sm:$0xff] %vm1326, %v1298
  %1352 = vst [vmem:[%s6 + $0xd0] sm:$0xff] %v1299
  %1353 = vst.msk [vmem:[%s6 + $0xd8] sm:$0xff] %vm1326, %v1300
  %1354 = vst [vmem:[%s6 + $0xe0] sm:$0xff] %v1301
  %1355 = vst.msk [vmem:[%s6 + $0xe8] sm:$0xff] %vm1326, %v1302
  %1356 = vst [vmem:[%s6 + $0xf0] sm:$0xff] %v1303
  %1357 = vst.msk [vmem:[%s6 + $0xf8] sm:$0xff] %vm1326, %v1304
  %1358 = vst [vmem:[%s6 + $0x100] sm:$0xff] %v1305
  %1359 = vst.msk [vmem:[%s6 + $0x108] sm:$0xff] %vm1326, %v1306
  %1360 = vst [vmem:[%s6 + $0x110] sm:$0xff] %v1307
  %1361 = vst.msk [vmem:[%s6 + $0x118] sm:$0xff] %vm1326, %v1308
  %1362 = vst [vmem:[%s6 + $0x120] sm:$0xff] %v1309
  %1363 = vst.msk [vmem:[%s6 + $0x128] sm:$0xff] %vm1326, %v1310
  %1364 = vst [vmem:[%s6 + $0x130] sm:$0xff] %v1311
  %1365 = vst.msk [vmem:[%s6 + $0x138] sm:$0xff] %vm1326, %v1312
  %1366 = vst [vmem:[%s6 + $0x140] sm:$0xff] %v1313
  %1367 = vst.msk [vmem:[%s6 + $0x148] sm:$0xff] %vm1326, %v1314
  %1368 = vst [vmem:[%s6 + $0x150] sm:$0xff] %v1315
  %1369 = vst.msk [vmem:[%s6 + $0x158] sm:$0xff] %vm1326, %v1316
  %1370 = vst [vmem:[%s6 + $0x160] sm:$0xff] %v1317
  %1371 = vst.msk [vmem:[%s6 + $0x168] sm:$0xff] %vm1326, %v1318
  %1372 = vst [vmem:[%s6 + $0x170] sm:$0xff] %v1319
  %1373 = vst.msk [vmem:[%s6 + $0x178] sm:$0xff] %vm1326, %v1320
  %1374 = vst [vmem:[%s6 + $0x180] sm:$0xff] %v1321
  %1375 = vst.msk [vmem:[%s6 + $0x188] sm:$0xff] %vm1326, %v1322
  %1376 = vst [vmem:[%s6 + $0x190] sm:$0xff] %v1323
  %1377 = vst.msk [vmem:[%s6 + $0x198] sm:$0xff] %vm1326, %v1324
  // Predicated region
  $region41: #{se_block.1} parent=0 // pred_check
    _
  $region42: #{se_block.1} parent=0 // pred_check_branch
    %1379 = sbr.rel (0) target = $region44
  $region43: #{se_block.1} parent=0 // pred_region
    _
  $region44: #{se_block.1} parent=0 // pred_fallthru
    _
  // Predicated region
  $region45: #{se_block.1} parent=0 // pred_check
    _
  $region46: #{se_block.1} parent=0 // pred_check_branch
    %1381 = sbr.rel (0) target = $region48
  $region47: #{se_block.1} parent=0 // pred_region
    _
  $region48: #{se_block.1} parent=0 // pred_fallthru
    _
  %1382 = vsyncmov [#allocation3]
  %s1383 = vpop.sfrf %1382
  %p1384 = scmp.eq.s32.totalorder %s1383, 0
  %p1385 = pneg %p1384
  %1387 = shalt.err (%p1385)

</llo_original>
